<compile_context>
chip_gen: v5e
topology: v5e:2x2
jax: 0.10.0
libtpu: 0.0.40
codegen_flags: <defaults>
</compile_context>

<pallas_src>
import math
import numpy as np
import jax
import jax.numpy as jnp
from jax.experimental import pallas as pl
from jax.experimental.pallas import tpu as pltpu


def _round_up(a: int, b: int) -> int:
    return (a + b - 1) // b * b


def _pick_tile_n(out_p: int, target: int) -> int:
    """Largest multiple of 128 that divides out_p and is <= target (min 128)."""
    target = max(128, min(target, out_p))
    best = 128
    for cand in range(128, target + 1, 128):
        if out_p % cand == 0:
            best = cand
    return best


def _vmem_cap_bytes() -> int:
    try:
        return int(pltpu.get_tpu_info().vmem_capacity_bytes)
    except Exception:
        return 128 << 20  # assume v5e/v6e-class if the query is unavailable


# ----------------------------------------------------------------------------
# One-time parameter glue (paid once, NOT per forward call).
# ----------------------------------------------------------------------------
def prepare_svft_params(u, vh, s_pre, m_rows, m_cols, m_vals, gate, bias,
                        *, compute_dtype=jnp.bfloat16):
    """u: [d_out, n], vh: [n, d_in], s_pre: [n], sparse M = (rows, cols, vals),
    gate: [1], bias: [d_out] or None."""
    d_out, n = u.shape
    n2, d_in = vh.shape
    assert n2 == n

    sig = jax.nn.sigmoid(gate[0])
    # del_s @ vh from sparse entries: O(k * d_in), no dense n x n materialized.
    dsvh = s_pre[:, None] * vh                                  # diag(s_pre) @ vh
    dsvh = dsvh.at[m_rows].add((m_vals * sig)[:, None] * vh[m_cols, :])
    A = dsvh.T.astype(compute_dtype)                            # [d_in, n]

    out_p = _round_up(d_out, 128)                               # lane-dense stores
    uT = jnp.pad(u.T, ((0, 0), (0, out_p - d_out))).astype(compute_dtype)
    if bias is None:
        bias = jnp.zeros((d_out,), jnp.float32)
    bias_p = jnp.pad(bias.astype(jnp.float32), (0, out_p - d_out)).reshape(1, out_p)

    return dict(A=A, uT=uT, bias=bias_p,
                d_in=d_in, n=n, d_out=d_out, out_p=out_p)


# ----------------------------------------------------------------------------
# Kernels
# ----------------------------------------------------------------------------
def _svft_big_kernel(A_ref, uT_ref, bias_ref, x_ref, o_ref, w_ref):
    """Weight-materialising path. Grid = (out-blocks j, token-blocks i),
    token axis innermost ("arbitrary").

    A_ref:    [d_in, n]       grid-invariant bf16  (= (del_s @ vh).T)
    uT_ref:   [n, tile_n]     j-block of u.T (bf16)
    bias_ref: [1, tile_n]     j-block of bias (f32)
    x_ref:    [tile_m, d_in]  i-block of tokens (bf16)
    o_ref:    [tile_m, tile_n]
    w_ref:    VMEM scratch [d_in, tile_n] bf16 — adapted weight tile, built once
              per output block (i == 0), reused across all token tiles.
    """
    @pl.when(pl.program_id(1) == 0)
    def _():
        w = jnp.dot(A_ref[...], uT_ref[...], preferred_element_type=jnp.float32)
        w_ref[...] = w.astype(w_ref.dtype)

    y = jnp.dot(x_ref[...], w_ref[...], preferred_element_type=jnp.float32)
    o_ref[...] = (y + bias_ref[...]).astype(o_ref.dtype)


def _svft_small_kernel(A_ref, uT_ref, bias_ref, x_ref, o_ref, xa_ref):
    """Factored decode path: y = (x @ A) @ u.T + bias. Grid = (out-blocks j,).
    x @ A is computed once (j == 0) and held in scratch across out-blocks, so
    the j axis must stay "arbitrary"."""
    @pl.when(pl.program_id(0) == 0)
    def _():
        xa = jnp.dot(x_ref[...], A_ref[...], preferred_element_type=jnp.float32)
        xa_ref[...] = xa.astype(xa_ref.dtype)

    y = jnp.dot(xa_ref[...], uT_ref[...], preferred_element_type=jnp.float32)
    o_ref[...] = (y + bias_ref[...]).astype(o_ref.dtype)


# ----------------------------------------------------------------------------
# Forward
# ----------------------------------------------------------------------------
def svft_forward(params, x, *, tile_m=512, tile_n=256, out_dtype=None,
                 small_t_factor=4):
    """x: [..., d_in] -> [..., d_out]."""
    A, uT, bias_p = params["A"], params["uT"], params["bias"]
    d_in, n = params["d_in"], params["n"]
    d_out, out_p = params["d_out"], params["out_p"]

    out_dtype = out_dtype or x.dtype
    compute_dtype = A.dtype
    itemsize = np.dtype(compute_dtype).itemsize
    out_itemsize = np.dtype(out_dtype).itemsize
    sublane = 16 if itemsize == 2 else 8

    lead = x.shape[:-1]
    T = int(np.prod(lead)) if lead else 1
    x2d = x.reshape(T, d_in).astype(compute_dtype)

    vmem_cap = int(0.8 * _vmem_cap_bytes())

    if T * small_t_factor <= d_out and T <= 1024:
        # ------------------- factored small-T (decode) path -------------------
        T_p = _round_up(T, sublane)
        x_p = x2d if T_p == T else jnp.pad(x2d, ((0, T_p - T), (0, 0)))
        tn = _pick_tile_n(out_p, min(512, tile_n * 2))
        grid = (out_p // tn,)

        vmem_need = (2 * d_in * n * itemsize          # A (margin for dbl-buffer fallback)
                     + 2 * T_p * d_in * itemsize      # x
                     + 2 * n * tn * itemsize          # uT tile
                     + 2 * tn * 4                     # bias tile
                     + 2 * T_p * tn * out_itemsize    # out tile
                     + T_p * n * itemsize)            # xa scratch
        vmem_limit = int(min(max(vmem_need + (4 << 20), 32 << 20), vmem_cap))

        def _call(single_buffer_invariant):
            inv_kw = ({"pipeline_mode": pl.Buffered(1)}
                      if single_buffer_invariant else {})
            return pl.pallas_call(
                _svft_small_kernel,
                out_shape=jax.ShapeDtypeStruct((T_p, out_p), out_dtype),
                grid=grid,
                in_specs=[
                    pl.BlockSpec((d_in, n), lambda j: (0, 0), **inv_kw),    # A
                    pl.BlockSpec((n, tn), lambda j: (0, j)),                # u.T
                    pl.BlockSpec((1, tn), lambda j: (0, j)),                # bias
                    pl.BlockSpec((T_p, d_in), lambda j: (0, 0), **inv_kw),  # x
                ],
                out_specs=pl.BlockSpec((T_p, tn), lambda j: (0, j)),
                scratch_shapes=[pltpu.VMEM((T_p, n), compute_dtype)],
                compiler_params=pltpu.CompilerParams(
                    dimension_semantics=("arbitrary",),
                    vmem_limit_bytes=vmem_limit),
            )(A, uT, bias_p, x_p)

        try:
            out = _call(True)
        except Exception:
            out = _call(False)
    else:
        # ------------------- weight-materialising path ------------------------
        # >= 2 output blocks when possible so both v7x TensorCores get work.
        tn_target = min(tile_n, out_p // 2 if out_p >= 256 else out_p)
        tn = _pick_tile_n(out_p, tn_target)

        tm = min(tile_m, _round_up(T, sublane))
        tm = _round_up(tm, sublane)
        T_p = _round_up(T, tm)
        x_p = x2d if T_p == T else jnp.pad(x2d, ((0, T_p - T), (0, 0)))
        grid = (out_p // tn, T_p // tm)   # out-blocks outer, token-blocks inner

        vmem_need = (2 * d_in * n * itemsize          # A (margin for dbl-buffer fallback)
                     + 2 * n * tn * itemsize          # uT tile
                     + 2 * tn * 4                     # bias tile
                     + 2 * tm * d_in * itemsize       # x tile
                     + 2 * tm * tn * out_itemsize     # out tile
                     + d_in * tn * itemsize)          # w scratch
        vmem_limit = int(min(max(vmem_need + (4 << 20), 32 << 20), vmem_cap))

        def _call(single_buffer_invariant):
            inv_kw = ({"pipeline_mode": pl.Buffered(1)}
                      if single_buffer_invariant else {})
            return pl.pallas_call(
                _svft_big_kernel,
                out_shape=jax.ShapeDtypeStruct((T_p, out_p), out_dtype),
                grid=grid,
                in_specs=[
                    pl.BlockSpec((d_in, n), lambda j, i: (0, 0), **inv_kw),  # A
                    pl.BlockSpec((n, tn), lambda j, i: (0, j)),              # u.T blk
                    pl.BlockSpec((1, tn), lambda j, i: (0, j)),              # bias blk
                    pl.BlockSpec((tm, d_in), lambda j, i: (i, 0)),           # x tile
                ],
                out_specs=pl.BlockSpec((tm, tn), lambda j, i: (i, j)),
                scratch_shapes=[pltpu.VMEM((d_in, tn), compute_dtype)],
                compiler_params=pltpu.CompilerParams(
                    dimension_semantics=("parallel", "arbitrary"),
                    vmem_limit_bytes=vmem_limit),
            )(A, uT, bias_p, x_p)

        try:
            out = _call(True)
        except Exception:
            out = _call(False)

    return out[:T, :d_out].astype(out_dtype).reshape(*lead, d_out)


# ----------------------------------------------------------------------------
# Test
# ----------------------------------------------------------------------------
if __name__ == "__main__":
    key = jax.random.PRNGKey(0)

    def make_case(k, d_in, d_out, batch, seq, off_diag=1):
        k_w, k_b, k_s, k_x = jax.random.split(k, 4)
        # Deterministic "pretrained" nn.Linear: weight [out, in], bias [out].
        W = jax.random.normal(k_w, (d_out, d_in), jnp.float32) / math.sqrt(d_in)
        bias = jax.random.normal(k_b, (d_out,), jnp.float32) * 0.1
        # SVD as in LinearWithSVFT.__init__ (rank=None -> full reduced rank).
        u, s, vh = jnp.linalg.svd(W, full_matrices=False)
        n = s.shape[0]
        # Banded sparsity pattern |i - j| <= off_diag (off_diag=1 ~ SVFT-plain).
        idx = [(i, j) for i in range(n) for j in range(n) if abs(i - j) <= off_diag]
        rows = jnp.array([i for i, _ in idx], dtype=jnp.int32)
        cols = jnp.array([j for _, j in idx], dtype=jnp.int32)
        kk = len(idx)
        # kaiming_normal_ on s[None, :]: std = sqrt(2 / fan_in), fan_in = kk.
        vals = jax.random.normal(k_s, (kk,), jnp.float32) * math.sqrt(2.0 / kk)
        gate = jnp.array([0.0], jnp.float32)      # sigmoid(0) = 0.5, as at init
        x = jax.random.normal(k_x, (batch, seq, d_in), jnp.float32)
        return u, s, vh, rows, cols, vals, gate, bias, x

    def reference(u, s, vh, rows, cols, vals, gate, bias, x):
        # Same composition order as the PyTorch module.
        n = s.shape[0]
        m_dense = jnp.zeros((n, n), jnp.float32).at[rows, cols].add(vals)
        del_s = jnp.diag(s) + m_dense * jax.nn.sigmoid(gate[0])
        weight = (del_s @ vh).T @ u.T                            # [in, out]
        return x @ weight + bias

    def run_case(k, d_in, d_out, batch, seq):
        u, s, vh, rows, cols, vals, gate, bias, x = make_case(k, d_in, d_out, batch, seq)
        params = prepare_svft_params(u, vh, s, rows, cols, vals, gate, bias)
        y = svft_forward(params, x)
        jax.block_until_ready(y)
        ref = reference(u, s, vh, rows, cols, vals, gate, bias, x)
        rel = (jnp.linalg.norm((y - ref).astype(jnp.float32))
               / jnp.linalg.norm(ref.astype(jnp.float32)))
        assert rel < 2e-2, f"kernel / reference relative error too high: {rel}"
        return y

    k1, k2 = jax.random.split(key)
    # Case 1: T >= d_out  -> weight-materialising path (main kernel).
    run_case(k1, d_in=32, d_out=16, batch=2, seq=8)
    # Case 2: T << d_out  -> factored small-T (decode) path.
    run_case(k2, d_in=32, d_out=256, batch=1, seq=8)

    print("KERNEL_OK")
</pallas_src>

<mosaic_0001>
module attributes {stable_mosaic.version = 11 : i64} {
  func.func @_svft_big_kernel(%arg0: i32, %arg1: i32, %arg2: memref<32x16xbf16, #tpu.memory_space<vmem>>, %arg3: memref<16x128xbf16, #tpu.memory_space<vmem>>, %arg4: memref<1x128xf32, #tpu.memory_space<vmem>>, %arg5: memref<16x32xbf16, #tpu.memory_space<vmem>>, %arg6: memref<16x128xf32, #tpu.memory_space<vmem>>, %arg7: memref<32x128xbf16, #tpu.memory_space<vmem>>) attributes {dimension_semantics = [#tpu.dimension_semantics<parallel>, #tpu.dimension_semantics<arbitrary>], iteration_bounds = array<i64: 1, 1>, scalar_prefetch = 0 : i64, scratch_operands = 1 : i64, tpu.core_type = #tpu.core_type<tc>, window_params = [{pipeline_mode = #tpu.pipeline_mode<synchronous>, transform_indices = @transform_0, window_bounds = array<i64: 32, 16>}, {transform_indices = @transform_1, window_bounds = array<i64: 16, 128>}, {transform_indices = @transform_2, window_bounds = array<i64: 1, 128>}, {transform_indices = @transform_3, window_bounds = array<i64: 16, 32>}, {transform_indices = @transform_4, window_bounds = array<i64: 16, 128>}]} {
    %c0_i32 = arith.constant 0 : i32
    %0 = arith.cmpi eq, %arg1, %c0_i32 : i32
    %1 = arith.extui %0 : i1 to i32
    %c0_i32_0 = arith.constant 0 : i32
    %2 = arith.cmpi ne, %1, %c0_i32_0 : i32
    scf.if %2 {
      %c0_8 = arith.constant 0 : index
      %c0_9 = arith.constant 0 : index
      %10 = vector.load %arg2[%c0_8, %c0_9] : memref<32x16xbf16, #tpu.memory_space<vmem>>, vector<32x16xbf16>
      %c0_10 = arith.constant 0 : index
      %c0_11 = arith.constant 0 : index
      %11 = vector.load %arg3[%c0_10, %c0_11] : memref<16x128xbf16, #tpu.memory_space<vmem>>, vector<16x128xbf16>
      %cst_12 = arith.constant dense<0.000000e+00> : vector<32x128xf32>
      %12 = tpu.matmul %10, %11, %cst_12 {dimension_numbers = #tpu.dot_dimension_numbers<[1], [0], [0], [1], [0, 0, 1, 1], [], []>} : vector<32x16xbf16>, vector<16x128xbf16>, vector<32x128xf32> -> vector<32x128xf32>
      %13 = arith.truncf %12 : vector<32x128xf32> to vector<32x128xbf16>
      %c0_13 = arith.constant 0 : index
      %c0_14 = arith.constant 0 : index
      %14 = vector.load %arg7[%c0_13, %c0_14] : memref<32x128xbf16, #tpu.memory_space<vmem>>, vector<32x128xbf16>
      tpu.vector_store %arg7[%c0_13, %c0_14], %13 {strides = array<i32>} : memref<32x128xbf16, #tpu.memory_space<vmem>>, vector<32x128xbf16>,
    } else {
    }
    %c0 = arith.constant 0 : index
    %c0_1 = arith.constant 0 : index
    %3 = vector.load %arg5[%c0, %c0_1] : memref<16x32xbf16, #tpu.memory_space<vmem>>, vector<16x32xbf16>
    %c0_2 = arith.constant 0 : index
    %c0_3 = arith.constant 0 : index
    %4 = vector.load %arg7[%c0_2, %c0_3] : memref<32x128xbf16, #tpu.memory_space<vmem>>, vector<32x128xbf16>
    %cst = arith.constant dense<0.000000e+00> : vector<16x128xf32>
    %5 = tpu.matmul %3, %4, %cst {dimension_numbers = #tpu.dot_dimension_numbers<[1], [0], [0], [1], [0, 0, 1, 1], [], []>} : vector<16x32xbf16>, vector<32x128xbf16>, vector<16x128xf32> -> vector<16x128xf32>
    %c0_4 = arith.constant 0 : index
    %c0_5 = arith.constant 0 : index
    %6 = vector.load %arg4[%c0_4, %c0_5] : memref<1x128xf32, #tpu.memory_space<vmem>>, vector<1x128xf32>
    %7 = vector.broadcast %6 : vector<1x128xf32> to vector<16x128xf32>
    %8 = arith.addf %5, %7 : vector<16x128xf32>
    %c0_6 = arith.constant 0 : index
    %c0_7 = arith.constant 0 : index
    %9 = vector.load %arg6[%c0_6, %c0_7] : memref<16x128xf32, #tpu.memory_space<vmem>>, vector<16x128xf32>
    tpu.vector_store %arg6[%c0_6, %c0_7], %8 {strides = array<i32>} : memref<16x128xf32, #tpu.memory_space<vmem>>, vector<16x128xf32>,
    return
  }
  func.func @transform_0(%arg0: i32, %arg1: i32) -> (i32, i32) {
    %c0_i32 = arith.constant 0 : i32
    %c0_i32_0 = arith.constant 0 : i32
    %c0_i32_1 = arith.constant 0 : i32
    return %c0_i32, %c0_i32_0 : i32, i32
  }
  func.func @transform_1(%arg0: i32, %arg1: i32) -> (i32, i32) {
    %c0_i32 = arith.constant 0 : i32
    %c0_i32_0 = arith.constant 0 : i32
    return %c0_i32, %arg0 : i32, i32
  }
  func.func @transform_2(%arg0: i32, %arg1: i32) -> (i32, i32) {
    %c0_i32 = arith.constant 0 : i32
    %c0_i32_0 = arith.constant 0 : i32
    return %c0_i32, %arg0 : i32, i32
  }
  func.func @transform_3(%arg0: i32, %arg1: i32) -> (i32, i32) {
    %c0_i32 = arith.constant 0 : i32
    %c0_i32_0 = arith.constant 0 : i32
    return %arg1, %c0_i32 : i32, i32
  }
  func.func @transform_4(%arg0: i32, %arg1: i32) -> (i32, i32) {
    %c0_i32 = arith.constant 0 : i32
    return %arg1, %arg0 : i32, i32
  }
}

module attributes {stable_mosaic.version = 11 : i64} {
  func.func @_svft_big_kernel(%arg0: i32, %arg1: i32, %arg2: memref<32x16xbf16, #tpu.memory_space<vmem>>, %arg3: memref<16x128xbf16, #tpu.memory_space<vmem>>, %arg4: memref<1x128xf32, #tpu.memory_space<vmem>>, %arg5: memref<16x32xbf16, #tpu.memory_space<vmem>>, %arg6: memref<16x128xf32, #tpu.memory_space<vmem>>, %arg7: memref<32x128xbf16, #tpu.memory_space<vmem>>) attributes {dimension_semantics = [#tpu.dimension_semantics<parallel>, #tpu.dimension_semantics<arbitrary>], iteration_bounds = array<i64: 1, 1>, scalar_prefetch = 0 : i64, scratch_operands = 1 : i64, tpu.core_type = #tpu.core_type<tc>, window_params = [{pipeline_mode = #tpu.pipeline_mode<synchronous>, transform_indices = @transform_0, window_bounds = array<i64: 32, 16>}, {transform_indices = @transform_1, window_bounds = array<i64: 16, 128>}, {transform_indices = @transform_2, window_bounds = array<i64: 1, 128>}, {transform_indices = @transform_3, window_bounds = array<i64: 16, 32>}, {transform_indices = @transform_4, window_bounds = array<i64: 16, 128>}]} {
    %c0_i32 = arith.constant 0 : i32
    %0 = arith.cmpi eq, %arg1, %c0_i32 : i32
    %1 = arith.extui %0 : i1 to i32
    %c0_i32_0 = arith.constant 0 : i32
    %2 = arith.cmpi ne, %1, %c0_i32_0 : i32
    scf.if %2 {
      %c0_8 = arith.constant 0 : index
      %c0_9 = arith.constant 0 : index
      %10 = vector.load %arg2[%c0_8, %c0_9] : memref<32x16xbf16, #tpu.memory_space<vmem>>, vector<32x16xbf16>
      %c0_10 = arith.constant 0 : index
      %c0_11 = arith.constant 0 : index
      %11 = vector.load %arg3[%c0_10, %c0_11] : memref<16x128xbf16, #tpu.memory_space<vmem>>, vector<16x128xbf16>
      %cst_12 = arith.constant dense<0.000000e+00> : vector<32x128xf32>
      %12 = tpu.matmul %10, %11, %cst_12 {dimension_numbers = #tpu.dot_dimension_numbers<[1], [0], [0], [1], [0, 0, 1, 1], [], []>} : vector<32x16xbf16>, vector<16x128xbf16>, vector<32x128xf32> -> vector<32x128xf32>
      %13 = arith.truncf %12 : vector<32x128xf32> to vector<32x128xbf16>
      %c0_13 = arith.constant 0 : index
      %c0_14 = arith.constant 0 : index
      %14 = vector.load %arg7[%c0_13, %c0_14] : memref<32x128xbf16, #tpu.memory_space<vmem>>, vector<32x128xbf16>
      tpu.vector_store %arg7[%c0_13, %c0_14], %13 {strides = array<i32>} : memref<32x128xbf16, #tpu.memory_space<vmem>>, vector<32x128xbf16>,
    } else {
    }
    %c0 = arith.constant 0 : index
    %c0_1 = arith.constant 0 : index
    %3 = vector.load %arg5[%c0, %c0_1] : memref<16x32xbf16, #tpu.memory_space<vmem>>, vector<16x32xbf16>
    %c0_2 = arith.constant 0 : index
    %c0_3 = arith.constant 0 : index
    %4 = vector.load %arg7[%c0_2, %c0_3] : memref<32x128xbf16, #tpu.memory_space<vmem>>, vector<32x128xbf16>
    %cst = arith.constant dense<0.000000e+00> : vector<16x128xf32>
    %5 = tpu.matmul %3, %4, %cst {dimension_numbers = #tpu.dot_dimension_numbers<[1], [0], [0], [1], [0, 0, 1, 1], [], []>} : vector<16x32xbf16>, vector<32x128xbf16>, vector<16x128xf32> -> vector<16x128xf32>
    %c0_4 = arith.constant 0 : index
    %c0_5 = arith.constant 0 : index
    %6 = vector.load %arg4[%c0_4, %c0_5] : memref<1x128xf32, #tpu.memory_space<vmem>>, vector<1x128xf32>
    %7 = vector.broadcast %6 : vector<1x128xf32> to vector<16x128xf32>
    %8 = arith.addf %5, %7 : vector<16x128xf32>
    %c0_6 = arith.constant 0 : index
    %c0_7 = arith.constant 0 : index
    %9 = vector.load %arg6[%c0_6, %c0_7] : memref<16x128xf32, #tpu.memory_space<vmem>>, vector<16x128xf32>
    tpu.vector_store %arg6[%c0_6, %c0_7], %8 {strides = array<i32>} : memref<16x128xf32, #tpu.memory_space<vmem>>, vector<16x128xf32>,
    return
  }
  func.func @transform_0(%arg0: i32, %arg1: i32) -> (i32, i32) {
    %c0_i32 = arith.constant 0 : i32
    %c0_i32_0 = arith.constant 0 : i32
    %c0_i32_1 = arith.constant 0 : i32
    return %c0_i32, %c0_i32_0 : i32, i32
  }
  func.func @transform_1(%arg0: i32, %arg1: i32) -> (i32, i32) {
    %c0_i32 = arith.constant 0 : i32
    %c0_i32_0 = arith.constant 0 : i32
    return %c0_i32, %arg0 : i32, i32
  }
  func.func @transform_2(%arg0: i32, %arg1: i32) -> (i32, i32) {
    %c0_i32 = arith.constant 0 : i32
    %c0_i32_0 = arith.constant 0 : i32
    return %c0_i32, %arg0 : i32, i32
  }
  func.func @transform_3(%arg0: i32, %arg1: i32) -> (i32, i32) {
    %c0_i32 = arith.constant 0 : i32
    %c0_i32_0 = arith.constant 0 : i32
    return %arg1, %c0_i32 : i32, i32
  }
  func.func @transform_4(%arg0: i32, %arg1: i32) -> (i32, i32) {
    %c0_i32 = arith.constant 0 : i32
    return %arg1, %arg0 : i32, i32
  }
}

</mosaic_0001>

<llo_original>
// kernel: tpu_custom_call.1
$region0: #{tpu_custom_call.1}
  #allocation0 [shape = 'u32[]', space=smem, size = 0x4, offset = 0x4, fixed_abs, tag = 'smem constant byte address 0x4 - core index']
  #allocation1 [shape = 'u32[72,128]{1,0:T(1,128)}', space=vmem, size = 0x9000, scoped, tag = 'internal scratch']
  #allocation2 [shape = 'bf16[32,128]{1,0:T(8,128)(2,1)}', space=vmem, size = 0x2000, scoped, tag = 'scratch operand']
  %s0 = inlined_call_operand.vmem [shape: bf16[32,16], index: 0, kind: input, shape index: {}]
  %s1 = inlined_call_operand.vmem [shape: bf16[16,128], index: 1, kind: input, shape index: {}]
  %s2 = inlined_call_operand.vmem [shape: f32[1,128], index: 2, kind: input, shape index: {}]
  %s3 = inlined_call_operand.vmem [shape: bf16[16,32], index: 3, kind: input, shape index: {}]
  %s4 = inlined_call_operand.hbm [shape: f32[16,128], index: 4, kind: output, shape index: {}]
  %s5 = sld [smem:[#allocation0]]
  $region30: #{tpu_custom_call.1} parent=0
    _
  %s7 = ssub.s32 1, %s5
  %s8 = scalar_select 0, %s7, %s5
  $region1: #{tpu_custom_call.1} parent=0
    #allocation3 [shape = 'u8[8192]{0}', space=vmem, size = 0x2000, scoped, tag = 'output window, operand 0, single buffered']
    #allocation4 [shape = 's32[1]{0}', space=sflag, size = 0x4, scoped, tag = 'scoped memory for tpu_custom_call.1']
    %9 = vsyncpa [#allocation4], 0
    // Predicated region
    $region2: #{tpu_custom_call.1} parent=1 // pred_check
      _
    $region3: #{tpu_custom_call.1} parent=1 // pred_check_branch
      %11 = sbr.rel (0) target = $region5
    $region4: #{tpu_custom_call.1} parent=1 // pred_region
      _
    $region5: #{tpu_custom_call.1} parent=1 // pred_fallthru
      _
    // Predicated region
    $region6: #{tpu_custom_call.1} parent=1 // pred_check
      _
    $region7: #{tpu_custom_call.1} parent=1 // pred_check_branch
      %13 = sbr.rel (0) target = $region9
    $region8: #{tpu_custom_call.1} parent=1 // pred_region
      _
    $region9: #{tpu_custom_call.1} parent=1 // pred_fallthru
      _
    // Predicated region
    $region10: #{tpu_custom_call.1} parent=1 // pred_check
      _
    $region11: #{tpu_custom_call.1} parent=1 // pred_check_branch
      %15 = sbr.rel (0) target = $region13
    $region12: #{tpu_custom_call.1} parent=1 // pred_region
      _
    $region13: #{tpu_custom_call.1} parent=1 // pred_fallthru
      _
    // Predicated region
    $region14: #{tpu_custom_call.1} parent=1 // pred_check
      _
    $region15: #{tpu_custom_call.1} parent=1 // pred_check_branch
      %17 = sbr.rel (0) target = $region17
    $region16: #{tpu_custom_call.1} parent=1 // pred_region
      _
    $region17: #{tpu_custom_call.1} parent=1 // pred_fallthru
      _
    %p19 = scmp.eq.s32.totalorder 0, 0
    // Predicated region
    $region18: #{tpu_custom_call.1} parent=1 // pred_check
      %p20 = pneg %p19
    $region19: #{tpu_custom_call.1} parent=1 // pred_check_branch
      %22 = sbr.rel (%p20) target = $region21
    $region20: #{tpu_custom_call.1} parent=1 // pred_region
      %v23 = vld [vmem:[%s0] sm:$0xf]
      %v24 = vld [vmem:[%s0 + $0x4] sm:$0xf]
      %v25 = vld [vmem:[%s0 + $0x8] sm:$0xf]
      %v26 = vld [vmem:[%s0 + $0xc] sm:$0xf]
      %v27 = vld [vmem:[%s1] sm:$0xf]
      %v28 = vld [vmem:[%s1 + $0x4] sm:$0xf]
      %v33 = vunpack.c.l.b16 %v23
      %v34 = vunpack.c.l.b16 %v24
      %v35 = vunpack.c.l.b16 %v25
      %v36 = vunpack.c.l.b16 %v26
      %v37 = vpack.c.b16 %v34, %v33
      %v38 = vpack.c.b16 %v36, %v35
      %v41 = vunpack.c.l.b16 %v27
      %v42 = vunpack.c.l.b16 %v28
      %v43 = vpack.c.b16 %v42, %v41
      %vm45 = vcmask 130048
      %v47 = vsel %vm45, %v37, 0
      %v50 = vsel %vm45, %v38, 0
      %52 = vmatpush.bf16.msra.mxu0 0
      %53 = vmatpush.bf16.msra.mxu0 0
      %54 = vmatpush.bf16.msra.mxu0 0
      %55 = vmatpush.bf16.msra.mxu0 0
      %56 = vmatpush.bf16.msra.mxu0 0
      %57 = vmatpush.bf16.msra.mxu0 0
      %58 = vmatpush.bf16.msra.mxu0 0
      %59 = vmatpush.bf16.msra.mxu0 %v43
      %60 = vmatmul.bf16.gmra.mxu0 %v47
      %v61 = vpop.f32.mrf.mxu0
      %v62 = vadd.f32 0.0, %v61
      %v63 = vpop.f32.mrf.mxu0
      %v64 = vadd.f32 0.0, %v63
      %65 = vmatmul.bf16.gmra.mxu0 %v50
      %v66 = vpop.f32.mrf.mxu0
      %v67 = vadd.f32 0.0, %v66
      %v68 = vpop.f32.mrf.mxu0
      %v69 = vadd.f32 0.0, %v68
      %70 = vdwg.mxu0
      %v71 = vpack.c.bf16 %v62, %v62
      %v72 = vpack.c.bf16 %v64, %v64
      %v73 = vpack.c.bf16 %v67, %v67
      %v74 = vpack.c.bf16 %v69, %v69
      %75 = vst [vmem:[#allocation2] sm:$0xf] %v71
      %76 = vst [vmem:[#allocation2 + $0x4] sm:$0xf] %v72
      %77 = vst [vmem:[#allocation2 + $0x8] sm:$0xf] %v73
      %78 = vst [vmem:[#allocation2 + $0xc] sm:$0xf] %v74
    $region21: #{tpu_custom_call.1} parent=1 // pred_fallthru
      _
    %v79 = vld [vmem:[%s3] sm:$0xf]
    %v80 = vld [vmem:[%s3 + $0x4] sm:$0xf]
    %v81 = vld [vmem:[#allocation2] sm:$0xf]
    %v82 = vld [vmem:[#allocation2 + $0x4] sm:$0xf]
    %v83 = vld [vmem:[#allocation2 + $0x8] sm:$0xf]
    %v84 = vld [vmem:[#allocation2 + $0xc] sm:$0xf]
    %v85 = vld [vmem:[%s2] sm:$0x1]
    %v87 = vperm.slane %v85, 0
    %v91 = vunpack.c.l.b16 %v79
    %v92 = vunpack.c.l.b16 %v80
    %v93 = vpack.c.b16 %v92, %v91
    %v98 = vunpack.c.l.b16 %v81
    %v99 = vunpack.c.l.b16 %v82
    %v100 = vunpack.c.l.b16 %v83
    %v101 = vunpack.c.l.b16 %v84
    %v102 = vpack.c.b16 %v99, %v98
    %v103 = vpack.c.b16 %v101, %v100
    %vm106 = vcmask 261120
    %v108 = vsel %vm106, %v93, 0
    %110 = vmatpush.bf16.msra.mxu0 0
    %111 = vmatpush.bf16.msra.mxu0 0
    %112 = vmatpush.bf16.msra.mxu0 0
    %113 = vmatpush.bf16.msra.mxu0 0
    %114 = vmatpush.bf16.msra.mxu0 0
    %115 = vmatpush.bf16.msra.mxu0 0
    %116 = vmatpush.bf16.msra.mxu0 %v103
    %117 = vmatpush.bf16.msra.mxu0 %v102
    %118 = vmatmul.bf16.gmra.mxu0 %v108
    %v119 = vpop.f32.mrf.mxu0
    %v120 = vadd.f32 %v87, %v119
    %v121 = vpop.f32.mrf.mxu0
    %v122 = vadd.f32 %v87, %v121
    %123 = vdwg.mxu0
    %124 = vst [vmem:[#allocation3] sm:$0xff] %v120
    %125 = vst [vmem:[#allocation3 + $0x8] sm:$0xff] %v122
    // Predicated region
    $region22: #{tpu_custom_call.1} parent=1 // pred_check
      _
    $region23: #{tpu_custom_call.1} parent=1 // pred_check_branch
      %127 = sbr.rel (0) target = $region25
    $region24: #{tpu_custom_call.1} parent=1 // pred_region
      %129 = vsyncadd [#allocation4], 0
      %s130 = sshll.u32 [#allocation3], 4
      %s131 = int_to_ptr.vmem [resolvable:$true] %s130
      %s132 = sshll.u32 %s4, 4
      %s133 = int_to_ptr.hbm [resolvable:$true] %s132
      %138 = dma.vmem_to_hbm [thread:$0]  %s131, 256, %s133, [#allocation4], 128, 128, 8
    $region25: #{tpu_custom_call.1} parent=1 // pred_fallthru
      _
    // Predicated region
    $region26: #{tpu_custom_call.1} parent=1 // pred_check
      _
    $region27: #{tpu_custom_call.1} parent=1 // pred_check_branch
      %140 = sbr.rel (0) target = $region29
    $region28: #{tpu_custom_call.1} parent=1 // pred_region
      %142 = dma.done [#allocation4], 256
    $region29: #{tpu_custom_call.1} parent=1 // pred_fallthru
      _
    %143 = vsyncpa [#allocation4], 1

// kernel: tpu_custom_call.1
$region0: #{tpu_custom_call.1}
  #allocation0 [shape = 'u32[]', space=smem, size = 0x4, offset = 0x4, fixed_abs, tag = 'smem constant byte address 0x4 - core index']
  #allocation1 [shape = 'u32[72,128]{1,0:T(1,128)}', space=vmem, size = 0x9000, scoped, tag = 'internal scratch']
  #allocation2 [shape = 'bf16[32,128]{1,0:T(8,128)(2,1)}', space=vmem, size = 0x2000, scoped, tag = 'scratch operand']
  %s0 = inlined_call_operand.vmem [shape: bf16[32,16], index: 0, kind: input, shape index: {}]
  %s1 = inlined_call_operand.vmem [shape: bf16[16,128], index: 1, kind: input, shape index: {}]
  %s2 = inlined_call_operand.vmem [shape: f32[1,128], index: 2, kind: input, shape index: {}]
  %s3 = inlined_call_operand.vmem [shape: bf16[16,32], index: 3, kind: input, shape index: {}]
  %s4 = inlined_call_operand.hbm [shape: f32[16,128], index: 4, kind: output, shape index: {}]
  %s5 = sld [smem:[#allocation0]]
  $region30: #{tpu_custom_call.1} parent=0
    _
  %s7 = ssub.s32 1, %s5
  %s8 = scalar_select 0, %s7, %s5
  $region1: #{tpu_custom_call.1} parent=0
    #allocation3 [shape = 'u8[8192]{0}', space=vmem, size = 0x2000, scoped, tag = 'output window, operand 0, single buffered']
    #allocation4 [shape = 's32[1]{0}', space=sflag, size = 0x4, scoped, tag = 'scoped memory for tpu_custom_call.1']
    %9 = vsyncpa [#allocation4], 0
    // Predicated region
    $region2: #{tpu_custom_call.1} parent=1 // pred_check
      _
    $region3: #{tpu_custom_call.1} parent=1 // pred_check_branch
      %11 = sbr.rel (0) target = $region5
    $region4: #{tpu_custom_call.1} parent=1 // pred_region
      _
    $region5: #{tpu_custom_call.1} parent=1 // pred_fallthru
      _
    // Predicated region
    $region6: #{tpu_custom_call.1} parent=1 // pred_check
      _
    $region7: #{tpu_custom_call.1} parent=1 // pred_check_branch
      %13 = sbr.rel (0) target = $region9
    $region8: #{tpu_custom_call.1} parent=1 // pred_region
      _
    $region9: #{tpu_custom_call.1} parent=1 // pred_fallthru
      _
    // Predicated region
    $region10: #{tpu_custom_call.1} parent=1 // pred_check
      _
    $region11: #{tpu_custom_call.1} parent=1 // pred_check_branch
      %15 = sbr.rel (0) target = $region13
    $region12: #{tpu_custom_call.1} parent=1 // pred_region
      _
    $region13: #{tpu_custom_call.1} parent=1 // pred_fallthru
      _
    // Predicated region
    $region14: #{tpu_custom_call.1} parent=1 // pred_check
      _
    $region15: #{tpu_custom_call.1} parent=1 // pred_check_branch
      %17 = sbr.rel (0) target = $region17
    $region16: #{tpu_custom_call.1} parent=1 // pred_region
      _
    $region17: #{tpu_custom_call.1} parent=1 // pred_fallthru
      _
    %p19 = scmp.eq.s32.totalorder 0, 0
    // Predicated region
    $region18: #{tpu_custom_call.1} parent=1 // pred_check
      %p20 = pneg %p19
    $region19: #{tpu_custom_call.1} parent=1 // pred_check_branch
      %22 = sbr.rel (%p20) target = $region21
    $region20: #{tpu_custom_call.1} parent=1 // pred_region
      %v23 = vld [vmem:[%s0] sm:$0xf]
      %v24 = vld [vmem:[%s0 + $0x4] sm:$0xf]
      %v25 = vld [vmem:[%s0 + $0x8] sm:$0xf]
      %v26 = vld [vmem:[%s0 + $0xc] sm:$0xf]
      %v27 = vld [vmem:[%s1] sm:$0xf]
      %v28 = vld [vmem:[%s1 + $0x4] sm:$0xf]
      %v33 = vunpack.c.l.b16 %v23
      %v34 = vunpack.c.l.b16 %v24
      %v35 = vunpack.c.l.b16 %v25
      %v36 = vunpack.c.l.b16 %v26
      %v37 = vpack.c.b16 %v34, %v33
      %v38 = vpack.c.b16 %v36, %v35
      %v41 = vunpack.c.l.b16 %v27
      %v42 = vunpack.c.l.b16 %v28
      %v43 = vpack.c.b16 %v42, %v41
      %vm45 = vcmask 130048
      %v47 = vsel %vm45, %v37, 0
      %v50 = vsel %vm45, %v38, 0
      %52 = vmatpush.bf16.msra.mxu0 0
      %53 = vmatpush.bf16.msra.mxu0 0
      %54 = vmatpush.bf16.msra.mxu0 0
      %55 = vmatpush.bf16.msra.mxu0 0
      %56 = vmatpush.bf16.msra.mxu0 0
      %57 = vmatpush.bf16.msra.mxu0 0
      %58 = vmatpush.bf16.msra.mxu0 0
      %59 = vmatpush.bf16.msra.mxu0 %v43
      %60 = vmatmul.bf16.gmra.mxu0 %v47
      %v61 = vpop.f32.mrf.mxu0
      %v62 = vadd.f32 0.0, %v61
      %v63 = vpop.f32.mrf.mxu0
      %v64 = vadd.f32 0.0, %v63
      %65 = vmatmul.bf16.gmra.mxu0 %v50
      %v66 = vpop.f32.mrf.mxu0
      %v67 = vadd.f32 0.0, %v66
      %v68 = vpop.f32.mrf.mxu0
      %v69 = vadd.f32 0.0, %v68
      %70 = vdwg.mxu0
      %v71 = vpack.c.bf16 %v62, %v62
      %v72 = vpack.c.bf16 %v64, %v64
      %v73 = vpack.c.bf16 %v67, %v67
      %v74 = vpack.c.bf16 %v69, %v69
      %75 = vst [vmem:[#allocation2] sm:$0xf] %v71
      %76 = vst [vmem:[#allocation2 + $0x4] sm:$0xf] %v72
      %77 = vst [vmem:[#allocation2 + $0x8] sm:$0xf] %v73
      %78 = vst [vmem:[#allocation2 + $0xc] sm:$0xf] %v74
    $region21: #{tpu_custom_call.1} parent=1 // pred_fallthru
      _
    %v79 = vld [vmem:[%s3] sm:$0xf]
    %v80 = vld [vmem:[%s3 + $0x4] sm:$0xf]
    %v81 = vld [vmem:[#allocation2] sm:$0xf]
    %v82 = vld [vmem:[#allocation2 + $0x4] sm:$0xf]
    %v83 = vld [vmem:[#allocation2 + $0x8] sm:$0xf]
    %v84 = vld [vmem:[#allocation2 + $0xc] sm:$0xf]
    %v85 = vld [vmem:[%s2] sm:$0x1]
    %v87 = vperm.slane %v85, 0
    %v91 = vunpack.c.l.b16 %v79
    %v92 = vunpack.c.l.b16 %v80
    %v93 = vpack.c.b16 %v92, %v91
    %v98 = vunpack.c.l.b16 %v81
    %v99 = vunpack.c.l.b16 %v82
    %v100 = vunpack.c.l.b16 %v83
    %v101 = vunpack.c.l.b16 %v84
    %v102 = vpack.c.b16 %v99, %v98
    %v103 = vpack.c.b16 %v101, %v100
    %vm106 = vcmask 261120
    %v108 = vsel %vm106, %v93, 0
    %110 = vmatpush.bf16.msra.mxu0 0
    %111 = vmatpush.bf16.msra.mxu0 0
    %112 = vmatpush.bf16.msra.mxu0 0
    %113 = vmatpush.bf16.msra.mxu0 0
    %114 = vmatpush.bf16.msra.mxu0 0
    %115 = vmatpush.bf16.msra.mxu0 0
    %116 = vmatpush.bf16.msra.mxu0 %v103
    %117 = vmatpush.bf16.msra.mxu0 %v102
    %118 = vmatmul.bf16.gmra.mxu0 %v108
    %v119 = vpop.f32.mrf.mxu0
    %v120 = vadd.f32 %v87, %v119
    %v121 = vpop.f32.mrf.mxu0
    %v122 = vadd.f32 %v87, %v121
    %123 = vdwg.mxu0
    %124 = vst [vmem:[#allocation3] sm:$0xff] %v120
    %125 = vst [vmem:[#allocation3 + $0x8] sm:$0xff] %v122
    // Predicated region
    $region22: #{tpu_custom_call.1} parent=1 // pred_check
      _
    $region23: #{tpu_custom_call.1} parent=1 // pred_check_branch
      %127 = sbr.rel (0) target = $region25
    $region24: #{tpu_custom_call.1} parent=1 // pred_region
      %129 = vsyncadd [#allocation4], 0
      %s130 = sshll.u32 [#allocation3], 4
      %s131 = int_to_ptr.vmem [resolvable:$true] %s130
      %s132 = sshll.u32 %s4, 4
      %s133 = int_to_ptr.hbm [resolvable:$true] %s132
      %138 = dma.vmem_to_hbm [thread:$0]  %s131, 256, %s133, [#allocation4], 128, 128, 8
    $region25: #{tpu_custom_call.1} parent=1 // pred_fallthru
      _
    // Predicated region
    $region26: #{tpu_custom_call.1} parent=1 // pred_check
      _
    $region27: #{tpu_custom_call.1} parent=1 // pred_check_branch
      %140 = sbr.rel (0) target = $region29
    $region28: #{tpu_custom_call.1} parent=1 // pred_region
      %142 = dma.done [#allocation4], 256
    $region29: #{tpu_custom_call.1} parent=1 // pred_fallthru
      _
    %143 = vsyncpa [#allocation4], 1

</llo_original>
